<compile_context>
chip_gen: v7x
topology: tpu7x:2x2x1
jax: 0.10.0
libtpu: 0.0.40
codegen_flags: <defaults>
</compile_context>

<pallas_src>
import jax
import jax.numpy as jnp
from jax import lax
from jax.experimental import pallas as pl
from jax.experimental.pallas import tpu as pltpu


def gmf_kernel(ids_ref,    # (1, 2, TB) int32 VMEM: row 0 = user ids, row 1 = item ids + n_user
               tbl_ref,    # (2*n_emb, n_user+n_item) f32 VMEM: [[user_T*w, 0], [0, item_T]]
               b_ref,      # (1, 1) f32 SMEM: Linear bias scalar
               out_ref):   # (1, 1, TB) f32 VMEM: lane-dense sigmoid outputs
    n2, n_rows = tbl_ref.shape
    n_emb = n2 // 2
    tb = out_ref.shape[-1]

    ids = ids_ref[0]                      # (2, TB)
    u_ids = ids[0:1, :]                   # (1, TB)
    i_ids = ids[1:2, :]                   # (1, TB)  (already offset by n_user in wrapper)

    # One fused one-hot for BOTH gathers: each batch column has exactly two
    # nonzeros (its user row in [0, n_user) and its item row in [n_user, n_rows)).
    # The combined table is block-diagonal, so the user block only picks up the
    # user hit and the item block only the item hit.  OOB ids select nothing.
    row_ids = lax.broadcasted_iota(jnp.int32, (n_rows, tb), 0)
    onehot = jnp.where((row_ids == u_ids) | (row_ids == i_ids), 1.0, 0.0
                       ).astype(tbl_ref.dtype)                       # (n_rows, TB)

    emb = jnp.dot(tbl_ref[...], onehot,
                  preferred_element_type=jnp.float32)                # (2*n_emb, TB)
    u_emb_w = emb[:n_emb, :]              # (n_emb, TB) user embedding, pre-scaled by w
    i_emb = emb[n_emb:, :]                # (n_emb, TB) item embedding

    prod = u_emb_w * i_emb                                           # VPU
    logits = jnp.sum(prod, axis=0, keepdims=True) + b_ref[0, 0]      # sublane reduce + bias
    # sigmoid = 1 / (1 + exp(-x)) on the EUP (exp + approximate reciprocal).
    sig = pl.reciprocal(1.0 + jnp.exp(-logits), approx=True)         # (1, TB)
    out_ref[0] = sig.astype(out_ref.dtype)


def gmf_forward(users, items, user_table, item_table, w, b, *, tb=512):
    """GMF forward: sigmoid((E_u[users] * E_i[items]) @ w.T + b).

    users, items : (B,) integer ids
    user_table   : (n_user, n_emb) f32  (PyTorch nn.Embedding.weight layout)
    item_table   : (n_item, n_emb) f32
    w            : (1, n_emb) f32       (PyTorch nn.Linear.weight layout)
    b            : (1,) f32             (PyTorch nn.Linear.bias layout)
    returns      : (B, 1) f32
    """
    B = users.shape[0]
    n_user, n_emb = user_table.shape
    n_item, _ = item_table.shape
    n_rows = n_user + n_item

    n_tiles = pl.cdiv(B, tb)
    b_pad = n_tiles * tb

    # Pad the batch to whole TB-lane tiles (padded slots use id 0; their outputs
    # are sliced away below).  Items are offset by n_user so a single one-hot
    # addresses the combined table.
    users_p = jnp.zeros((b_pad,), jnp.int32).at[:B].set(users.astype(jnp.int32))
    items_p = jnp.zeros((b_pad,), jnp.int32).at[:B].set(items.astype(jnp.int32))
    users_t = users_p.reshape(n_tiles, 1, tb)
    items_t = (items_p + n_user).reshape(n_tiles, 1, tb)
    ids_t = jnp.concatenate([users_t, items_t], axis=1)              # (n_tiles, 2, TB)

    # Block-diagonal combined table with the Linear weight folded into the user
    # block (wrapper-side weight prep; fuses with the transpose/astype).
    w_row = w.reshape(1, n_emb).astype(jnp.float32)
    user_blk = (user_table.astype(jnp.float32) * w_row).T            # (n_emb, n_user)
    item_blk = item_table.astype(jnp.float32).T                      # (n_emb, n_item)
    combined = jnp.zeros((2 * n_emb, n_rows), jnp.float32)
    combined = combined.at[:n_emb, :n_user].set(user_blk)
    combined = combined.at[n_emb:, n_user:].set(item_blk)
    b_s = b.reshape(1, 1).astype(jnp.float32)

    # Per-generation VMEM budget: physical minus headroom, capped at 100 MiB.
    try:
        phys = int(pltpu.get_tpu_info().vmem_capacity_bytes)
    except Exception:
        phys = 64 << 20  # conservative (v7x per-TC)
    cap = max(32 << 20, min(phys - (16 << 20), 100 << 20))
    table_bytes = int(combined.size) * 4
    work_bytes = 4 * tb * (n_rows + 4 * n_emb + 8)   # one-hot + emb + ids + out per step
    vmem_limit = int(max(32 << 20, min(cap, 2 * table_bytes + 4 * work_bytes + (8 << 20))))

    def build(table_spec):
        return pl.pallas_call(
            gmf_kernel,
            out_shape=jax.ShapeDtypeStruct((n_tiles, 1, tb), jnp.float32),
            grid_spec=pltpu.PrefetchScalarGridSpec(
                num_scalar_prefetch=0,
                grid=(n_tiles,),
                in_specs=[
                    pl.BlockSpec((1, 2, tb), lambda i: (i, 0, 0)),        # fused id block
                    table_spec,                                           # resident table
                    pl.BlockSpec(memory_space=pltpu.MemorySpace.SMEM),    # bias scalar
                ],
                out_specs=pl.BlockSpec((1, 1, tb), lambda i: (i, 0, 0)),  # lane-dense slab
            ),
            compiler_params=pltpu.CompilerParams(
                dimension_semantics=("parallel",),
                vmem_limit_bytes=vmem_limit,
            ),
        )

    tbl_shape = (2 * n_emb, n_rows)
    try:
        # Constant index_map -> never re-fetched; single-buffer to halve table VMEM.
        tbl_spec = pl.BlockSpec(tbl_shape, lambda i: (0, 0),
                                pipeline_mode=pl.Buffered(1))
        out = build(tbl_spec)(ids_t, combined, b_s)
    except Exception:
        # Fallback for jax versions without pipeline_mode support on TPU pallas_call.
        tbl_spec = pl.BlockSpec(tbl_shape, lambda i: (0, 0))
        out = build(tbl_spec)(ids_t, combined, b_s)

    return out.reshape(-1)[:B].reshape(B, 1)


if __name__ == "__main__":
    n_user, n_item, n_emb, B = 16, 32, 8, 8

    key = jax.random.PRNGKey(0)
    k_uemb, k_iemb, k_w, k_b, k_u, k_i = jax.random.split(key, 6)

    # Mirror the PyTorch __init__: Embedding weights ~ Normal(0, 1);
    # Linear.weight ~ Uniform(0, 1); Linear.bias keeps the PyTorch default
    # Uniform(-1/sqrt(fan_in), +1/sqrt(fan_in)).
    user_table = jax.random.normal(k_uemb, (n_user, n_emb), dtype=jnp.float32)
    item_table = jax.random.normal(k_iemb, (n_item, n_emb), dtype=jnp.float32)
    w = jax.random.uniform(k_w, (1, n_emb), dtype=jnp.float32)
    bound = 1.0 / float(n_emb) ** 0.5
    b = jax.random.uniform(k_b, (1,), dtype=jnp.float32, minval=-bound, maxval=bound)

    users = jax.random.randint(k_u, (B,), 0, n_user, dtype=jnp.int32)
    items = jax.random.randint(k_i, (B,), 0, n_item, dtype=jnp.int32)

    preds = gmf_forward(users, items, user_table, item_table, w, b)
    preds = jax.block_until_ready(preds)

    # Pure-JAX reference of the PyTorch forward for a correctness check.
    ref = jax.nn.sigmoid((user_table[users] * item_table[items]) @ w.T + b)
    assert preds.shape == (B, 1)
    # Tolerance accounts for the EUP approximate reciprocal (~1e-4 relative).
    assert jnp.allclose(preds, ref, atol=2e-3, rtol=2e-3), \
        float(jnp.max(jnp.abs(preds - ref)))

    print("KERNEL_OK")
</pallas_src>

<mosaic_0001>
module attributes {stable_mosaic.version = 11 : i64} {
  func.func @gmf_kernel(%arg0: i32, %arg1: memref<1x2x512xi32, #tpu.memory_space<vmem>>, %arg2: memref<16x48xf32, #tpu.memory_space<vmem>>, %arg3: memref<1x1xf32, #tpu.memory_space<smem>>, %arg4: memref<1x1x512xf32, #tpu.memory_space<vmem>>) attributes {dimension_semantics = [#tpu.dimension_semantics<parallel>], iteration_bounds = array<i64: 1>, scalar_prefetch = 0 : i64, scratch_operands = 0 : i64, tpu.core_type = #tpu.core_type<tc>, window_params = [{transform_indices = @transform_0, window_bounds = array<i64: 1, 2, 512>}, {pipeline_mode = #tpu.pipeline_mode<synchronous>, transform_indices = @transform_1, window_bounds = array<i64: 16, 48>}, {transform_indices = @transform_2, window_bounds = array<i64: 1, 1>}, {transform_indices = @transform_3, window_bounds = array<i64: 1, 1, 512>}]} {
    %c0 = arith.constant 0 : index
    %c0_0 = arith.constant 0 : index
    %c0_1 = arith.constant 0 : index
    %0 = vector.load %arg1[%c0, %c0_0, %c0_1] : memref<1x2x512xi32, #tpu.memory_space<vmem>>, vector<1x2x512xi32>
    %1 = vector.shape_cast %0 : vector<1x2x512xi32> to vector<2x512xi32>
    %2 = vector.extract_strided_slice %1 {offsets = [0, 0], sizes = [1, 512], strides = [1, 1]} : vector<2x512xi32> to vector<1x512xi32>
    %3 = vector.extract_strided_slice %1 {offsets = [1, 0], sizes = [1, 512], strides = [1, 1]} : vector<2x512xi32> to vector<1x512xi32>
    %4 = tpu.iota {dimensions = array<i32: 0>} : vector<48x512xi32>
    %5 = vector.broadcast %2 : vector<1x512xi32> to vector<48x512xi32>
    %6 = arith.cmpi eq, %4, %5 : vector<48x512xi32>
    %7 = vector.broadcast %3 : vector<1x512xi32> to vector<48x512xi32>
    %8 = arith.cmpi eq, %4, %7 : vector<48x512xi32>
    %9 = arith.ori %6, %8 : vector<48x512xi1>
    %cst = arith.constant 1.000000e+00 : f32
    %cst_2 = arith.constant 0.000000e+00 : f32
    %10 = vector.broadcast %cst : f32 to vector<48x512xf32>
    %11 = vector.broadcast %cst_2 : f32 to vector<48x512xf32>
    %12 = arith.select %9, %10, %11 : vector<48x512xi1>, vector<48x512xf32>
    %c0_3 = arith.constant 0 : index
    %c0_4 = arith.constant 0 : index
    %13 = vector.load %arg2[%c0_3, %c0_4] : memref<16x48xf32, #tpu.memory_space<vmem>>, vector<16x48xf32>
    %cst_5 = arith.constant dense<0.000000e+00> : vector<16x512xf32>
    %14 = tpu.matmul %13, %12, %cst_5 {dimension_numbers = #tpu.dot_dimension_numbers<[1], [0], [0], [1], [0, 0, 1, 1], [], []>} : vector<16x48xf32>, vector<48x512xf32>, vector<16x512xf32> -> vector<16x512xf32>
    %15 = vector.extract_strided_slice %14 {offsets = [0, 0], sizes = [8, 512], strides = [1, 1]} : vector<16x512xf32> to vector<8x512xf32>
    %16 = vector.extract_strided_slice %14 {offsets = [8, 0], sizes = [8, 512], strides = [1, 1]} : vector<16x512xf32> to vector<8x512xf32>
    %17 = arith.mulf %15, %16 : vector<8x512xf32>
    %cst_6 = arith.constant dense<0.000000e+00> : vector<512xf32>
    %18 = vector.multi_reduction <add>, %17, %cst_6 [0] : vector<8x512xf32> to vector<512xf32>
    %19 = vector.shape_cast %18 : vector<512xf32> to vector<1x512xf32>
    %c0_7 = arith.constant 0 : index
    %c0_8 = arith.constant 0 : index
    %20 = memref.load %arg3[%c0_7, %c0_8] : memref<1x1xf32, #tpu.memory_space<smem>>
    %21 = vector.broadcast %20 : f32 to vector<1x512xf32>
    %22 = arith.addf %19, %21 : vector<1x512xf32>
    %cst_9 = arith.constant 0.000000e+00 : f32
    %23 = vector.broadcast %cst_9 : f32 to vector<1x512xf32>
    %24 = arith.subf %23, %22 : vector<1x512xf32>
    %25 = math.exp %24 : vector<1x512xf32>
    %cst_10 = arith.constant 1.000000e+00 : f32
    %26 = vector.broadcast %cst_10 : f32 to vector<1x512xf32>
    %27 = arith.addf %26, %25 : vector<1x512xf32>
    %28 = tpu.reciprocal %27 {approx = true} : vector<1x512xf32> -> vector<1x512xf32>
    %c0_11 = arith.constant 0 : index
    %c0_12 = arith.constant 0 : index
    %c0_13 = arith.constant 0 : index
    %29 = vector.load %arg4[%c0_11, %c0_12, %c0_13] : memref<1x1x512xf32, #tpu.memory_space<vmem>>, vector<1x1x512xf32>
    %30 = vector.shape_cast %29 : vector<1x1x512xf32> to vector<1x512xf32>
    %31 = vector.shape_cast %28 : vector<1x512xf32> to vector<1x1x512xf32>
    tpu.vector_store %arg4[%c0_11, %c0_12, %c0_13], %31 {strides = array<i32>} : memref<1x1x512xf32, #tpu.memory_space<vmem>>, vector<1x1x512xf32>,
    return
  }
  func.func @transform_0(%arg0: i32) -> (i32, i32, i32) {
    %c0_i32 = arith.constant 0 : i32
    %c0_i32_0 = arith.constant 0 : i32
    %c0_i32_1 = arith.constant 0 : i32
    return %arg0, %c0_i32, %c0_i32_0 : i32, i32, i32
  }
  func.func @transform_1(%arg0: i32) -> (i32, i32) {
    %c0_i32 = arith.constant 0 : i32
    %c0_i32_0 = arith.constant 0 : i32
    %c0_i32_1 = arith.constant 0 : i32
    return %c0_i32, %c0_i32_0 : i32, i32
  }
  func.func @transform_2(%arg0: i32) -> (i32, i32) {
    %c0_i32 = arith.constant 0 : i32
    %c0_i32_0 = arith.constant 0 : i32
    %c0_i32_1 = arith.constant 0 : i32
    return %c0_i32, %c0_i32_0 : i32, i32
  }
  func.func @transform_3(%arg0: i32) -> (i32, i32, i32) {
    %c0_i32 = arith.constant 0 : i32
    %c0_i32_0 = arith.constant 0 : i32
    %c0_i32_1 = arith.constant 0 : i32
    return %arg0, %c0_i32, %c0_i32_0 : i32, i32, i32
  }
}

module attributes {stable_mosaic.version = 11 : i64} {
  func.func @gmf_kernel(%arg0: i32, %arg1: memref<1x2x512xi32, #tpu.memory_space<vmem>>, %arg2: memref<16x48xf32, #tpu.memory_space<vmem>>, %arg3: memref<1x1xf32, #tpu.memory_space<smem>>, %arg4: memref<1x1x512xf32, #tpu.memory_space<vmem>>) attributes {dimension_semantics = [#tpu.dimension_semantics<parallel>], iteration_bounds = array<i64: 1>, scalar_prefetch = 0 : i64, scratch_operands = 0 : i64, tpu.core_type = #tpu.core_type<tc>, window_params = [{transform_indices = @transform_0, window_bounds = array<i64: 1, 2, 512>}, {pipeline_mode = #tpu.pipeline_mode<synchronous>, transform_indices = @transform_1, window_bounds = array<i64: 16, 48>}, {transform_indices = @transform_2, window_bounds = array<i64: 1, 1>}, {transform_indices = @transform_3, window_bounds = array<i64: 1, 1, 512>}]} {
    %c0 = arith.constant 0 : index
    %c0_0 = arith.constant 0 : index
    %c0_1 = arith.constant 0 : index
    %0 = vector.load %arg1[%c0, %c0_0, %c0_1] : memref<1x2x512xi32, #tpu.memory_space<vmem>>, vector<1x2x512xi32>
    %1 = vector.shape_cast %0 : vector<1x2x512xi32> to vector<2x512xi32>
    %2 = vector.extract_strided_slice %1 {offsets = [0, 0], sizes = [1, 512], strides = [1, 1]} : vector<2x512xi32> to vector<1x512xi32>
    %3 = vector.extract_strided_slice %1 {offsets = [1, 0], sizes = [1, 512], strides = [1, 1]} : vector<2x512xi32> to vector<1x512xi32>
    %4 = tpu.iota {dimensions = array<i32: 0>} : vector<48x512xi32>
    %5 = vector.broadcast %2 : vector<1x512xi32> to vector<48x512xi32>
    %6 = arith.cmpi eq, %4, %5 : vector<48x512xi32>
    %7 = vector.broadcast %3 : vector<1x512xi32> to vector<48x512xi32>
    %8 = arith.cmpi eq, %4, %7 : vector<48x512xi32>
    %9 = arith.ori %6, %8 : vector<48x512xi1>
    %cst = arith.constant 1.000000e+00 : f32
    %cst_2 = arith.constant 0.000000e+00 : f32
    %10 = vector.broadcast %cst : f32 to vector<48x512xf32>
    %11 = vector.broadcast %cst_2 : f32 to vector<48x512xf32>
    %12 = arith.select %9, %10, %11 : vector<48x512xi1>, vector<48x512xf32>
    %c0_3 = arith.constant 0 : index
    %c0_4 = arith.constant 0 : index
    %13 = vector.load %arg2[%c0_3, %c0_4] : memref<16x48xf32, #tpu.memory_space<vmem>>, vector<16x48xf32>
    %cst_5 = arith.constant dense<0.000000e+00> : vector<16x512xf32>
    %14 = tpu.matmul %13, %12, %cst_5 {dimension_numbers = #tpu.dot_dimension_numbers<[1], [0], [0], [1], [0, 0, 1, 1], [], []>} : vector<16x48xf32>, vector<48x512xf32>, vector<16x512xf32> -> vector<16x512xf32>
    %15 = vector.extract_strided_slice %14 {offsets = [0, 0], sizes = [8, 512], strides = [1, 1]} : vector<16x512xf32> to vector<8x512xf32>
    %16 = vector.extract_strided_slice %14 {offsets = [8, 0], sizes = [8, 512], strides = [1, 1]} : vector<16x512xf32> to vector<8x512xf32>
    %17 = arith.mulf %15, %16 : vector<8x512xf32>
    %cst_6 = arith.constant dense<0.000000e+00> : vector<512xf32>
    %18 = vector.multi_reduction <add>, %17, %cst_6 [0] : vector<8x512xf32> to vector<512xf32>
    %19 = vector.shape_cast %18 : vector<512xf32> to vector<1x512xf32>
    %c0_7 = arith.constant 0 : index
    %c0_8 = arith.constant 0 : index
    %20 = memref.load %arg3[%c0_7, %c0_8] : memref<1x1xf32, #tpu.memory_space<smem>>
    %21 = vector.broadcast %20 : f32 to vector<1x512xf32>
    %22 = arith.addf %19, %21 : vector<1x512xf32>
    %cst_9 = arith.constant 0.000000e+00 : f32
    %23 = vector.broadcast %cst_9 : f32 to vector<1x512xf32>
    %24 = arith.subf %23, %22 : vector<1x512xf32>
    %25 = math.exp %24 : vector<1x512xf32>
    %cst_10 = arith.constant 1.000000e+00 : f32
    %26 = vector.broadcast %cst_10 : f32 to vector<1x512xf32>
    %27 = arith.addf %26, %25 : vector<1x512xf32>
    %28 = tpu.reciprocal %27 {approx = true} : vector<1x512xf32> -> vector<1x512xf32>
    %c0_11 = arith.constant 0 : index
    %c0_12 = arith.constant 0 : index
    %c0_13 = arith.constant 0 : index
    %29 = vector.load %arg4[%c0_11, %c0_12, %c0_13] : memref<1x1x512xf32, #tpu.memory_space<vmem>>, vector<1x1x512xf32>
    %30 = vector.shape_cast %29 : vector<1x1x512xf32> to vector<1x512xf32>
    %31 = vector.shape_cast %28 : vector<1x512xf32> to vector<1x1x512xf32>
    tpu.vector_store %arg4[%c0_11, %c0_12, %c0_13], %31 {strides = array<i32>} : memref<1x1x512xf32, #tpu.memory_space<vmem>>, vector<1x1x512xf32>,
    return
  }
  func.func @transform_0(%arg0: i32) -> (i32, i32, i32) {
    %c0_i32 = arith.constant 0 : i32
    %c0_i32_0 = arith.constant 0 : i32
    %c0_i32_1 = arith.constant 0 : i32
    return %arg0, %c0_i32, %c0_i32_0 : i32, i32, i32
  }
  func.func @transform_1(%arg0: i32) -> (i32, i32) {
    %c0_i32 = arith.constant 0 : i32
    %c0_i32_0 = arith.constant 0 : i32
    %c0_i32_1 = arith.constant 0 : i32
    return %c0_i32, %c0_i32_0 : i32, i32
  }
  func.func @transform_2(%arg0: i32) -> (i32, i32) {
    %c0_i32 = arith.constant 0 : i32
    %c0_i32_0 = arith.constant 0 : i32
    %c0_i32_1 = arith.constant 0 : i32
    return %c0_i32, %c0_i32_0 : i32, i32
  }
  func.func @transform_3(%arg0: i32) -> (i32, i32, i32) {
    %c0_i32 = arith.constant 0 : i32
    %c0_i32_0 = arith.constant 0 : i32
    %c0_i32_1 = arith.constant 0 : i32
    return %arg0, %c0_i32, %c0_i32_0 : i32, i32, i32
  }
}

</mosaic_0001>

<llo_original>
// kernel: tpu_custom_call.1
$region0: #{tpu_custom_call.1}
  #allocation0 [shape = 'u32[]', space=smem, size = 0x4, offset = 0x4, fixed_abs, tag = 'smem constant byte address 0x4 - core index']
  #allocation1 [shape = 'u32[144,128]{1,0:T(1,128)}', space=vmem, size = 0x12000, scoped, tag = 'internal scratch']
  #allocation2 [shape = 'f32[1,1]{1,0:T(1,128)S(6)}', space=smem, size = 0x200, scoped, tag = 'scoped memory for tpu_custom_call.1']
  %s0 = inlined_call_operand.hbm [shape: s32[1,2,512], index: 0, kind: input, shape index: {}]
  %s1 = inlined_call_operand.hbm [shape: f32[16,48], index: 1, kind: input, shape index: {}]
  %s2 = inlined_call_operand.<no memory space> [shape: f32[1,1], index: 2, kind: input, shape index: {}]
  %s3 = inlined_call_operand.hbm [shape: f32[1,1,512], index: 3, kind: output, shape index: {}]
  %s4 = sld [smem:[#allocation0]]
  $region30: #{tpu_custom_call.1} parent=0
    _
  %s6 = ssub.s32 1, %s4
  %s7 = scalar_select 0, %s6, %s4
  %8 = sst [smem:[#allocation2]] %s2
  $region1: #{tpu_custom_call.1} parent=0
    #allocation3 [shape = 'u8[4096]{0}', space=vmem, size = 0x1000, scoped, tag = 'input window, operand 0, single buffered']
    #allocation4 [shape = 's32[1]{0}', space=sflag, size = 0x4, scoped, tag = 'scoped memory for tpu_custom_call.1']
    #allocation5 [shape = 's32[1]{0}', space=sflag, size = 0x4, scoped, tag = 'scoped memory for tpu_custom_call.1']
    #allocation6 [shape = 'u8[8192]{0}', space=vmem, size = 0x2000, scoped, tag = 'input window, operand 1, single buffered']
    #allocation7 [shape = 's32[1]{0}', space=sflag, size = 0x4, scoped, tag = 'scoped memory for tpu_custom_call.1']
    #allocation8 [shape = 'u8[2048]{0}', space=vmem, size = 0x800, scoped, tag = 'output window, operand 0, single buffered']
    %9 = vsyncpa [#allocation4], 0
    %10 = vsyncpa [#allocation7], 0
    %11 = vsyncpa [#allocation5], 0
    // Predicated region
    $region2: #{tpu_custom_call.1} parent=1 // pred_check
      _
    $region3: #{tpu_custom_call.1} parent=1 // pred_check_branch
      %13 = sbr.rel (0) target = $region5
    $region4: #{tpu_custom_call.1} parent=1 // pred_region
      %s15 = ssub.s32 128, 128
      %16 = vsyncadd [#allocation4], %s15
      %s18 = sshll.u32 [#allocation3], 4
      %s19 = int_to_ptr.vmem [resolvable:$true] %s18
      %21 = dma.hbm_to_vmem [thread:$0]  %s0, 128, %s19, [#allocation4]
    $region5: #{tpu_custom_call.1} parent=1 // pred_fallthru
      _
    // Predicated region
    $region6: #{tpu_custom_call.1} parent=1 // pred_check
      _
    $region7: #{tpu_custom_call.1} parent=1 // pred_check_branch
      %23 = sbr.rel (0) target = $region9
    $region8: #{tpu_custom_call.1} parent=1 // pred_region
      %s25 = ssub.s32 256, 256
      %26 = vsyncadd [#allocation7], %s25
      %s27 = sshll.u32 [#allocation6], 4
      %s28 = int_to_ptr.vmem [resolvable:$true] %s27
      %33 = dma.hbm_to_vmem [thread:$0]  %s1, 256, %s28, [#allocation7], 128, 128, 8
    $region9: #{tpu_custom_call.1} parent=1 // pred_fallthru
      _
    // Predicated region
    $region10: #{tpu_custom_call.1} parent=1 // pred_check
      _
    $region11: #{tpu_custom_call.1} parent=1 // pred_check_branch
      %35 = sbr.rel (0) target = $region13
    $region12: #{tpu_custom_call.1} parent=1 // pred_region
      _
    $region13: #{tpu_custom_call.1} parent=1 // pred_fallthru
      _
    // Predicated region
    $region14: #{tpu_custom_call.1} parent=1 // pred_check
      _
    $region15: #{tpu_custom_call.1} parent=1 // pred_check_branch
      %37 = sbr.rel (0) target = $region17
    $region16: #{tpu_custom_call.1} parent=1 // pred_region
      %38 = dma.done [#allocation4], 128
    $region17: #{tpu_custom_call.1} parent=1 // pred_fallthru
      _
    // Predicated region
    $region18: #{tpu_custom_call.1} parent=1 // pred_check
      _
    $region19: #{tpu_custom_call.1} parent=1 // pred_check_branch
      %40 = sbr.rel (0) target = $region21
    $region20: #{tpu_custom_call.1} parent=1 // pred_region
      %41 = dma.done [#allocation7], 256
    $region21: #{tpu_custom_call.1} parent=1 // pred_fallthru
      _
    %v42 = vld [vmem:[#allocation3] sm:$0xff]
    %v43 = vlaneseq
    %v44 = vshrl.u32 %v43, 7
    %v45 = vadd.s32 %v44, 8
    %v46 = vadd.s32 %v44, 16
    %v47 = vadd.s32 %v44, 24
    %v48 = vadd.s32 %v44, 32
    %v49 = vadd.s32 %v44, 40
    %v50 = vlaneseq
    %v51 = vshrl.u32 %v50, 7
    %v52 = vsub.s32 0, %v51
    %v53 = vrot.slane %v42, %v52
    %v54 = vlaneseq
    %v55 = vshrl.u32 %v54, 7
    %v56 = vsub.s32 2, %v55
    %v57 = vrot.slane %v42, %v56
    %v58 = vlaneseq
    %v59 = vshrl.u32 %v58, 7
    %v60 = vsub.s32 4, %v59
    %v61 = vrot.slane %v42, %v60
    %v62 = vlaneseq
    %v63 = vshrl.u32 %v62, 7
    %v64 = vsub.s32 6, %v63
    %v65 = vrot.slane %v42, %v64
    %v66 = vlaneseq
    %v67 = vshrl.u32 %v66, 7
    %v68 = vsub.s32 0, %v67
    %v69 = vrot.slane %v53, %v68
    %v70 = vlaneseq
    %v71 = vshrl.u32 %v70, 7
    %v72 = vsub.s32 0, %v71
    %v73 = vrot.slane %v57, %v72
    %v74 = vlaneseq
    %v75 = vshrl.u32 %v74, 7
    %v76 = vsub.s32 0, %v75
    %v77 = vrot.slane %v61, %v76
    %v78 = vlaneseq
    %v79 = vshrl.u32 %v78, 7
    %v80 = vsub.s32 0, %v79
    %v81 = vrot.slane %v65, %v80
    %vm82 = vcmp.eq.s32.totalorder %v44, %v69
    %vm83 = vcmp.eq.s32.totalorder %v44, %v73
    %vm84 = vcmp.eq.s32.totalorder %v44, %v77
    %vm85 = vcmp.eq.s32.totalorder %v44, %v81
    %vm86 = vcmp.eq.s32.totalorder %v45, %v69
    %vm87 = vcmp.eq.s32.totalorder %v45, %v73
    %vm88 = vcmp.eq.s32.totalorder %v45, %v77
    %vm89 = vcmp.eq.s32.totalorder %v45, %v81
    %vm90 = vcmp.eq.s32.totalorder %v46, %v69
    %vm91 = vcmp.eq.s32.totalorder %v46, %v73
    %vm92 = vcmp.eq.s32.totalorder %v46, %v77
    %vm93 = vcmp.eq.s32.totalorder %v46, %v81
    %vm94 = vcmp.eq.s32.totalorder %v47, %v69
    %vm95 = vcmp.eq.s32.totalorder %v47, %v73
    %vm96 = vcmp.eq.s32.totalorder %v47, %v77
    %vm97 = vcmp.eq.s32.totalorder %v47, %v81
    %vm98 = vcmp.eq.s32.totalorder %v48, %v69
    %vm99 = vcmp.eq.s32.totalorder %v48, %v73
    %vm100 = vcmp.eq.s32.totalorder %v48, %v77
    %vm101 = vcmp.eq.s32.totalorder %v48, %v81
    %vm102 = vcmp.eq.s32.totalorder %v49, %v69
    %vm103 = vcmp.eq.s32.totalorder %v49, %v73
    %vm104 = vcmp.eq.s32.totalorder %v49, %v77
    %vm105 = vcmp.eq.s32.totalorder %v49, %v81
    %v106 = vlaneseq
    %v107 = vshrl.u32 %v106, 7
    %v108 = vsub.s32 1, %v107
    %v109 = vrot.slane %v42, %v108
    %v110 = vlaneseq
    %v111 = vshrl.u32 %v110, 7
    %v112 = vsub.s32 3, %v111
    %v113 = vrot.slane %v42, %v112
    %v114 = vlaneseq
    %v115 = vshrl.u32 %v114, 7
    %v116 = vsub.s32 5, %v115
    %v117 = vrot.slane %v42, %v116
    %v118 = vlaneseq
    %v119 = vshrl.u32 %v118, 7
    %v120 = vsub.s32 7, %v119
    %v121 = vrot.slane %v42, %v120
    %v122 = vlaneseq
    %v123 = vshrl.u32 %v122, 7
    %v124 = vsub.s32 1, %v123
    %v125 = vrot.slane %v109, %v124
    %v126 = vlaneseq
    %v127 = vshrl.u32 %v126, 7
    %v128 = vsub.s32 1, %v127
    %v129 = vrot.slane %v113, %v128
    %v130 = vlaneseq
    %v131 = vshrl.u32 %v130, 7
    %v132 = vsub.s32 1, %v131
    %v133 = vrot.slane %v117, %v132
    %v134 = vlaneseq
    %v135 = vshrl.u32 %v134, 7
    %v136 = vsub.s32 1, %v135
    %v137 = vrot.slane %v121, %v136
    %vm138 = vcmp.eq.s32.totalorder %v44, %v125
    %vm139 = vcmp.eq.s32.totalorder %v44, %v129
    %vm140 = vcmp.eq.s32.totalorder %v44, %v133
    %vm141 = vcmp.eq.s32.totalorder %v44, %v137
    %vm142 = vcmp.eq.s32.totalorder %v45, %v125
    %vm143 = vcmp.eq.s32.totalorder %v45, %v129
    %vm144 = vcmp.eq.s32.totalorder %v45, %v133
    %vm145 = vcmp.eq.s32.totalorder %v45, %v137
    %vm146 = vcmp.eq.s32.totalorder %v46, %v125
    %vm147 = vcmp.eq.s32.totalorder %v46, %v129
    %vm148 = vcmp.eq.s32.totalorder %v46, %v133
    %vm149 = vcmp.eq.s32.totalorder %v46, %v137
    %vm150 = vcmp.eq.s32.totalorder %v47, %v125
    %vm151 = vcmp.eq.s32.totalorder %v47, %v129
    %vm152 = vcmp.eq.s32.totalorder %v47, %v133
    %vm153 = vcmp.eq.s32.totalorder %v47, %v137
    %vm154 = vcmp.eq.s32.totalorder %v48, %v125
    %vm155 = vcmp.eq.s32.totalorder %v48, %v129
    %vm156 = vcmp.eq.s32.totalorder %v48, %v133
    %vm157 = vcmp.eq.s32.totalorder %v48, %v137
    %vm158 = vcmp.eq.s32.totalorder %v49, %v125
    %vm159 = vcmp.eq.s32.totalorder %v49, %v129
    %vm160 = vcmp.eq.s32.totalorder %v49, %v133
    %vm161 = vcmp.eq.s32.totalorder %v49, %v137
    %vm162 = vmor %vm82, %vm138
    %vm163 = vmor %vm83, %vm139
    %vm164 = vmor %vm84, %vm140
    %vm165 = vmor %vm85, %vm141
    %vm166 = vmor %vm86, %vm142
    %vm167 = vmor %vm87, %vm143
    %vm168 = vmor %vm88, %vm144
    %vm169 = vmor %vm89, %vm145
    %vm170 = vmor %vm90, %vm146
    %vm171 = vmor %vm91, %vm147
    %vm172 = vmor %vm92, %vm148
    %vm173 = vmor %vm93, %vm149
    %vm174 = vmor %vm94, %vm150
    %vm175 = vmor %vm95, %vm151
    %vm176 = vmor %vm96, %vm152
    %vm177 = vmor %vm97, %vm153
    %vm178 = vmor %vm98, %vm154
    %vm179 = vmor %vm99, %vm155
    %vm180 = vmor %vm100, %vm156
    %vm181 = vmor %vm101, %vm157
    %vm182 = vmor %vm102, %vm158
    %vm183 = vmor %vm103, %vm159
    %vm184 = vmor %vm104, %vm160
    %vm185 = vmor %vm105, %vm161
    %v186 = vsel %vm162, 1.0, 0.0
    %v187 = vsel %vm163, 1.0, 0.0
    %v188 = vsel %vm164, 1.0, 0.0
    %v189 = vsel %vm165, 1.0, 0.0
    %v190 = vsel %vm166, 1.0, 0.0
    %v191 = vsel %vm167, 1.0, 0.0
    %v192 = vsel %vm168, 1.0, 0.0
    %v193 = vsel %vm169, 1.0, 0.0
    %v194 = vsel %vm170, 1.0, 0.0
    %v195 = vsel %vm171, 1.0, 0.0
    %v196 = vsel %vm172, 1.0, 0.0
    %v197 = vsel %vm173, 1.0, 0.0
    %v198 = vsel %vm174, 1.0, 0.0
    %v199 = vsel %vm175, 1.0, 0.0
    %v200 = vsel %vm176, 1.0, 0.0
    %v201 = vsel %vm177, 1.0, 0.0
    %v202 = vsel %vm178, 1.0, 0.0
    %v203 = vsel %vm179, 1.0, 0.0
    %v204 = vsel %vm180, 1.0, 0.0
    %v205 = vsel %vm181, 1.0, 0.0
    %v206 = vsel %vm182, 1.0, 0.0
    %v207 = vsel %vm183, 1.0, 0.0
    %v208 = vsel %vm184, 1.0, 0.0
    %v209 = vsel %vm185, 1.0, 0.0
    %v210 = vld [vmem:[#allocation6] sm:$0xff]
    %v211 = vld [vmem:[#allocation6 + $0x8] sm:$0xff]
    %vm212 = vcmask 392192
    %v214 = vsel %vm212, %v210, 0
    %v217 = vsel %vm212, %v211, 0
    %219 = vmatprep.subr.mxu0 %v187
    %220 = vmatpush1.msra.mxu0 %v186
    %221 = vmatprep.subr.mxu0 %v191
    %222 = vmatpush1.msra.mxu0 %v190
    %223 = vmatprep.subr.mxu0 %v195
    %224 = vmatpush1.msra.mxu0 %v194
    %225 = vmatprep.subr.mxu0 %v199
    %226 = vmatpush1.msra.mxu0 %v198
    %227 = vmatprep.subr.mxu0 %v203
    %228 = vmatpush1.msra.mxu0 %v202
    %229 = vmatprep.subr.mxu0 %v207
    %230 = vmatpush1.msra.mxu0 %v206
    %231 = vmatprep.subr.mxu0 0.0
    %232 = vmatpush1.msra.mxu0 0.0
    %233 = vmatprep.subr.mxu0 0.0
    %234 = vmatpush1.msra.mxu0 0.0
    %235 = vmatprep.subr.mxu0 0.0
    %236 = vmatpush1.msra.mxu0 0.0
    %237 = vmatprep.subr.mxu0 0.0
    %238 = vmatpush1.msra.mxu0 0.0
    %239 = vmatprep.subr.mxu0 0.0
    %240 = vmatpush1.msra.mxu0 0.0
    %241 = vmatprep.subr.mxu0 0.0
    %242 = vmatpush1.msra.mxu0 0.0
    %243 = vmatprep.subr.mxu0 0.0
    %244 = vmatpush1.msra.mxu0 0.0
    %245 = vmatprep.subr.mxu0 0.0
    %246 = vmatpush1.msra.mxu0 0.0
    %247 = vmatprep.subr.mxu0 0.0
    %248 = vmatpush1.msra.mxu0 0.0
    %249 = vmatprep.subr.mxu0 0.0
    %250 = vmatpush1.msra.mxu0 0.0
    %251 = vmatprep.subr.mxu0 0.0
    %252 = vmatpush1.msra.mxu0 0.0
    %253 = vmatprep.subr.mxu0 0.0
    %254 = vmatpush1.msra.mxu0 0.0
    %255 = vmatprep.subr.mxu0 0.0
    %256 = vmatpush1.msra.mxu0 0.0
    %257 = vmatprep.subr.mxu0 0.0
    %258 = vmatpush1.msra.mxu0 0.0
    %259 = vmatprep.subr.mxu0 0.0
    %260 = vmatpush1.msra.mxu0 0.0
    %261 = vmatprep.subr.mxu0 0.0
    %262 = vmatpush1.msra.mxu0 0.0
    %263 = vmatprep.subr.mxu0 0.0
    %264 = vmatpush1.msra.mxu0 0.0
    %265 = vmatprep.subr.mxu0 0.0
    %266 = vmatpush1.msra.mxu0 0.0
    %267 = vmatprep.subr.mxu0 0.0
    %268 = vmatpush1.msra.mxu0 0.0
    %269 = vmatprep.subr.mxu0 0.0
    %270 = vmatpush1.msra.mxu0 0.0
    %271 = vmatprep.subr.mxu0 0.0
    %272 = vmatpush1.msra.mxu0 0.0
    %273 = vmatprep.subr.mxu0 0.0
    %274 = vmatpush1.msra.mxu0 0.0
    %275 = vmatprep.subr.mxu0 0.0
    %276 = vmatpush1.msra.mxu0 0.0
    %277 = vmatprep.subr.mxu0 0.0
    %278 = vmatpush1.msra.mxu0 0.0
    %279 = vmatprep.subr.mxu0 0.0
    %280 = vmatpush1.msra.mxu0 0.0
    %281 = vmatprep.subr.mxu0 0.0
    %282 = vmatpush1.msra.mxu0 0.0
    %283 = vmatprep.mubr.f32.mxu0 0.0
    %284 = vmatmul.mubr.f32.gmra.mrb[0].mxu0 %v214
    %v285 = vpop.f32.mrb[0].mxu0
    %v286 = vadd.f32 0.0, %v285
    %v287 = vpop.f32.mrb[0].mxu0
    %v288 = vadd.f32 0.0, %v287
    %289 = vmatprep.mubr.f32.mxu0 0.0
    %290 = vmatmul.mubr.f32.gmra.mrb[0].mxu0 %v217
    %v291 = vpop.f32.mrb[0].mxu0
    %v292 = vadd.f32 0.0, %v291
    %v293 = vpop.f32.mrb[0].mxu0
    %v294 = vadd.f32 0.0, %v293
    %295 = vdwg.mxu0
    %296 = vmatprep.subr.mxu0 %v189
    %297 = vmatpush1.msra.mxu0 %v188
    %298 = vmatprep.subr.mxu0 %v193
    %299 = vmatpush1.msra.mxu0 %v192
    %300 = vmatprep.subr.mxu0 %v197
    %301 = vmatpush1.msra.mxu0 %v196
    %302 = vmatprep.subr.mxu0 %v201
    %303 = vmatpush1.msra.mxu0 %v200
    %304 = vmatprep.subr.mxu0 %v205
    %305 = vmatpush1.msra.mxu0 %v204
    %306 = vmatprep.subr.mxu0 %v209
    %307 = vmatpush1.msra.mxu0 %v208
    %308 = vmatprep.subr.mxu0 0.0
    %309 = vmatpush1.msra.mxu0 0.0
    %310 = vmatprep.subr.mxu0 0.0
    %311 = vmatpush1.msra.mxu0 0.0
    %312 = vmatprep.subr.mxu0 0.0
    %313 = vmatpush1.msra.mxu0 0.0
    %314 = vmatprep.subr.mxu0 0.0
    %315 = vmatpush1.msra.mxu0 0.0
    %316 = vmatprep.subr.mxu0 0.0
    %317 = vmatpush1.msra.mxu0 0.0
    %318 = vmatprep.subr.mxu0 0.0
    %319 = vmatpush1.msra.mxu0 0.0
    %320 = vmatprep.subr.mxu0 0.0
    %321 = vmatpush1.msra.mxu0 0.0
    %322 = vmatprep.subr.mxu0 0.0
    %323 = vmatpush1.msra.mxu0 0.0
    %324 = vmatprep.subr.mxu0 0.0
    %325 = vmatpush1.msra.mxu0 0.0
    %326 = vmatprep.subr.mxu0 0.0
    %327 = vmatpush1.msra.mxu0 0.0
    %328 = vmatprep.subr.mxu0 0.0
    %329 = vmatpush1.msra.mxu0 0.0
    %330 = vmatprep.subr.mxu0 0.0
    %331 = vmatpush1.msra.mxu0 0.0
    %332 = vmatprep.subr.mxu0 0.0
    %333 = vmatpush1.msra.mxu0 0.0
    %334 = vmatprep.subr.mxu0 0.0
    %335 = vmatpush1.msra.mxu0 0.0
    %336 = vmatprep.subr.mxu0 0.0
    %337 = vmatpush1.msra.mxu0 0.0
    %338 = vmatprep.subr.mxu0 0.0
    %339 = vmatpush1.msra.mxu0 0.0
    %340 = vmatprep.subr.mxu0 0.0
    %341 = vmatpush1.msra.mxu0 0.0
    %342 = vmatprep.subr.mxu0 0.0
    %343 = vmatpush1.msra.mxu0 0.0
    %344 = vmatprep.subr.mxu0 0.0
    %345 = vmatpush1.msra.mxu0 0.0
    %346 = vmatprep.subr.mxu0 0.0
    %347 = vmatpush1.msra.mxu0 0.0
    %348 = vmatprep.subr.mxu0 0.0
    %349 = vmatpush1.msra.mxu0 0.0
    %350 = vmatprep.subr.mxu0 0.0
    %351 = vmatpush1.msra.mxu0 0.0
    %352 = vmatprep.subr.mxu0 0.0
    %353 = vmatpush1.msra.mxu0 0.0
    %354 = vmatprep.subr.mxu0 0.0
    %355 = vmatpush1.msra.mxu0 0.0
    %356 = vmatprep.subr.mxu0 0.0
    %357 = vmatpush1.msra.mxu0 0.0
    %358 = vmatprep.subr.mxu0 0.0
    %359 = vmatpush1.msra.mxu0 0.0
    %360 = vmatprep.mubr.f32.mxu0 0.0
    %361 = vmatmul.mubr.f32.gmra.mrb[0].mxu0 %v214
    %v362 = vpop.f32.mrb[0].mxu0
    %v363 = vadd.f32 0.0, %v362
    %v364 = vpop.f32.mrb[0].mxu0
    %v365 = vadd.f32 0.0, %v364
    %366 = vmatprep.mubr.f32.mxu0 0.0
    %367 = vmatmul.mubr.f32.gmra.mrb[0].mxu0 %v217
    %v368 = vpop.f32.mrb[0].mxu0
    %v369 = vadd.f32 0.0, %v368
    %v370 = vpop.f32.mrb[0].mxu0
    %v371 = vadd.f32 0.0, %v370
    %372 = vdwg.mxu0
    %v373 = vmul.f32 %v286, %v292
    %v374 = vmul.f32 %v288, %v294
    %v375 = vmul.f32 %v363, %v369
    %v376 = vmul.f32 %v365, %v371
    %v377 = vrot.slane %v373, 4
    %v378 = vadd.f32 %v373, %v377
    %v379 = vrot.slane %v378, 2
    %v380 = vadd.f32 %v378, %v379
    %v381 = vrot.slane %v380, 1
    %v382 = vadd.f32 %v380, %v381
    %v383 = vrot.slane %v374, 4
    %v384 = vadd.f32 %v374, %v383
    %v385 = vrot.slane %v384, 2
    %v386 = vadd.f32 %v384, %v385
    %v387 = vrot.slane %v386, 1
    %v388 = vadd.f32 %v386, %v387
    %v389 = vrot.slane %v375, 4
    %v390 = vadd.f32 %v375, %v389
    %v391 = vrot.slane %v390, 2
    %v392 = vadd.f32 %v390, %v391
    %v393 = vrot.slane %v392, 1
    %v394 = vadd.f32 %v392, %v393
    %v395 = vrot.slane %v376, 4
    %v396 = vadd.f32 %v376, %v395
    %v397 = vrot.slane %v396, 2
    %v398 = vadd.f32 %v396, %v397
    %v399 = vrot.slane %v398, 1
    %v400 = vadd.f32 %v398, %v399
    %s401 = sld [smem:[#allocation2]]
    %v402 = vstv %s401
    %v403 = vadd.f32 %v382, %v402
    %v404 = vadd.f32 %v388, %v402
    %v405 = vadd.f32 %v394, %v402
    %v406 = vadd.f32 %v400, %v402
    %v407 = vsub.f32 0.0, %v403
    %v408 = vsub.f32 0.0, %v404
    %v409 = vsub.f32 0.0, %v405
    %v410 = vsub.f32 0.0, %v406
    %v411 = vmul.f32 %v407, 1.442695
    %v412 = vpow.pop %v411
    %v413 = vmul.f32 %v408, 1.442695
    %v414 = vpow.pop %v413
    %v415 = vmul.f32 %v409, 1.442695
    %v416 = vpow.pop %v415
    %v417 = vmul.f32 %v410, 1.442695
    %v418 = vpow.pop %v417
    %v419 = vadd.f32 %v412, 1.0
    %v420 = vadd.f32 %v414, 1.0
    %v421 = vadd.f32 %v416, 1.0
    %v422 = vadd.f32 %v418, 1.0
    %v423 = vrcp.pop %v419
    %v424 = vrcp.pop %v420
    %v425 = vrcp.pop %v421
    %v426 = vrcp.pop %v422
    %v431 = vcombine.low %v423, %v424
    %v432 = vcombine.low %v425, %v426
    %v434 = vunpack.c.l.s4 1966171168
    %v435 = vunpack.c.0.s8 %v434
    %v436 = vlaneseq
    %v437 = vshrl.u32 %v436, 7
    %v438 = vsub.s32 %v435, %v437
    %v439 = vrot.slane %v431, %v438
    %v441 = vunpack.c.l.s4 1966171168
    %v442 = vunpack.c.0.s8 %v441
    %v443 = vlaneseq
    %v444 = vshrl.u32 %v443, 7
    %v445 = vsub.s32 %v442, %v444
    %v446 = vrot.slane %v432, %v445
    %v447 = vcombine.low %v439, %v446
    %v449 = vunpack.c.l.s4 1966171168
    %v450 = vunpack.c.0.s8 %v449
    %v451 = vlaneseq
    %v452 = vshrl.u32 %v451, 7
    %v453 = vsub.s32 %v450, %v452
    %v454 = vrot.slane %v447, %v453
    %v456 = vlaneseq
    %vm457 = vcmp.ge.s32.totalorder %v456, 0
    %vm458 = vcmp.lt.s32.totalorder %v456, 512
    %vm459 = vmand %vm457, %vm458
    %460 = vst.msk [vmem:[#allocation8] sm:$0xf] %vm459, %v454
    // Predicated region
    $region22: #{tpu_custom_call.1} parent=1 // pred_check
      _
    $region23: #{tpu_custom_call.1} parent=1 // pred_check_branch
      %462 = sbr.rel (0) target = $region25
    $region24: #{tpu_custom_call.1} parent=1 // pred_region
      %s464 = ssub.s32 64, 64
      %465 = vsyncadd [#allocation5], %s464
      %s467 = sshll.u32 [#allocation8], 4
      %s468 = int_to_ptr.vmem [resolvable:$true] %s467
      %470 = dma.vmem_to_hbm [thread:$0]  %s468, 64, %s3, [#allocation5]
    $region25: #{tpu_custom_call.1} parent=1 // pred_fallthru
      _
    // Predicated region
    $region26: #{tpu_custom_call.1} parent=1 // pred_check
      _
    $region27: #{tpu_custom_call.1} parent=1 // pred_check_branch
      %472 = sbr.rel (0) target = $region29
    $region28: #{tpu_custom_call.1} parent=1 // pred_region
      %473 = dma.done [#allocation5], 64
    $region29: #{tpu_custom_call.1} parent=1 // pred_fallthru
      _
    %474 = vsyncpa [#allocation4], 1
    %475 = vsyncpa [#allocation7], 1
    %476 = vsyncpa [#allocation5], 1

// kernel: tpu_custom_call.1
$region0: #{tpu_custom_call.1}
  #allocation0 [shape = 'u32[]', space=smem, size = 0x4, offset = 0x4, fixed_abs, tag = 'smem constant byte address 0x4 - core index']
  #allocation1 [shape = 'u32[144,128]{1,0:T(1,128)}', space=vmem, size = 0x12000, scoped, tag = 'internal scratch']
  #allocation2 [shape = 'f32[1,1]{1,0:T(1,128)S(6)}', space=smem, size = 0x200, scoped, tag = 'scoped memory for tpu_custom_call.1']
  %s0 = inlined_call_operand.hbm [shape: s32[1,2,512], index: 0, kind: input, shape index: {}]
  %s1 = inlined_call_operand.hbm [shape: f32[16,48], index: 1, kind: input, shape index: {}]
  %s2 = inlined_call_operand.<no memory space> [shape: f32[1,1], index: 2, kind: input, shape index: {}]
  %s3 = inlined_call_operand.hbm [shape: f32[1,1,512], index: 3, kind: output, shape index: {}]
  %s4 = sld [smem:[#allocation0]]
  $region30: #{tpu_custom_call.1} parent=0
    _
  %s6 = ssub.s32 1, %s4
  %s7 = scalar_select 0, %s6, %s4
  %8 = sst [smem:[#allocation2]] %s2
  $region1: #{tpu_custom_call.1} parent=0
    #allocation3 [shape = 'u8[4096]{0}', space=vmem, size = 0x1000, scoped, tag = 'input window, operand 0, single buffered']
    #allocation4 [shape = 's32[1]{0}', space=sflag, size = 0x4, scoped, tag = 'scoped memory for tpu_custom_call.1']
    #allocation5 [shape = 's32[1]{0}', space=sflag, size = 0x4, scoped, tag = 'scoped memory for tpu_custom_call.1']
    #allocation6 [shape = 'u8[8192]{0}', space=vmem, size = 0x2000, scoped, tag = 'input window, operand 1, single buffered']
    #allocation7 [shape = 's32[1]{0}', space=sflag, size = 0x4, scoped, tag = 'scoped memory for tpu_custom_call.1']
    #allocation8 [shape = 'u8[2048]{0}', space=vmem, size = 0x800, scoped, tag = 'output window, operand 0, single buffered']
    %9 = vsyncpa [#allocation4], 0
    %10 = vsyncpa [#allocation7], 0
    %11 = vsyncpa [#allocation5], 0
    // Predicated region
    $region2: #{tpu_custom_call.1} parent=1 // pred_check
      _
    $region3: #{tpu_custom_call.1} parent=1 // pred_check_branch
      %13 = sbr.rel (0) target = $region5
    $region4: #{tpu_custom_call.1} parent=1 // pred_region
      %s15 = ssub.s32 128, 128
      %16 = vsyncadd [#allocation4], %s15
      %s18 = sshll.u32 [#allocation3], 4
      %s19 = int_to_ptr.vmem [resolvable:$true] %s18
      %21 = dma.hbm_to_vmem [thread:$0]  %s0, 128, %s19, [#allocation4]
    $region5: #{tpu_custom_call.1} parent=1 // pred_fallthru
      _
    // Predicated region
    $region6: #{tpu_custom_call.1} parent=1 // pred_check
      _
    $region7: #{tpu_custom_call.1} parent=1 // pred_check_branch
      %23 = sbr.rel (0) target = $region9
    $region8: #{tpu_custom_call.1} parent=1 // pred_region
      %s25 = ssub.s32 256, 256
      %26 = vsyncadd [#allocation7], %s25
      %s27 = sshll.u32 [#allocation6], 4
      %s28 = int_to_ptr.vmem [resolvable:$true] %s27
      %33 = dma.hbm_to_vmem [thread:$0]  %s1, 256, %s28, [#allocation7], 128, 128, 8
    $region9: #{tpu_custom_call.1} parent=1 // pred_fallthru
      _
    // Predicated region
    $region10: #{tpu_custom_call.1} parent=1 // pred_check
      _
    $region11: #{tpu_custom_call.1} parent=1 // pred_check_branch
      %35 = sbr.rel (0) target = $region13
    $region12: #{tpu_custom_call.1} parent=1 // pred_region
      _
    $region13: #{tpu_custom_call.1} parent=1 // pred_fallthru
      _
    // Predicated region
    $region14: #{tpu_custom_call.1} parent=1 // pred_check
      _
    $region15: #{tpu_custom_call.1} parent=1 // pred_check_branch
      %37 = sbr.rel (0) target = $region17
    $region16: #{tpu_custom_call.1} parent=1 // pred_region
      %38 = dma.done [#allocation4], 128
    $region17: #{tpu_custom_call.1} parent=1 // pred_fallthru
      _
    // Predicated region
    $region18: #{tpu_custom_call.1} parent=1 // pred_check
      _
    $region19: #{tpu_custom_call.1} parent=1 // pred_check_branch
      %40 = sbr.rel (0) target = $region21
    $region20: #{tpu_custom_call.1} parent=1 // pred_region
      %41 = dma.done [#allocation7], 256
    $region21: #{tpu_custom_call.1} parent=1 // pred_fallthru
      _
    %v42 = vld [vmem:[#allocation3] sm:$0xff]
    %v43 = vlaneseq
    %v44 = vshrl.u32 %v43, 7
    %v45 = vadd.s32 %v44, 8
    %v46 = vadd.s32 %v44, 16
    %v47 = vadd.s32 %v44, 24
    %v48 = vadd.s32 %v44, 32
    %v49 = vadd.s32 %v44, 40
    %v50 = vlaneseq
    %v51 = vshrl.u32 %v50, 7
    %v52 = vsub.s32 0, %v51
    %v53 = vrot.slane %v42, %v52
    %v54 = vlaneseq
    %v55 = vshrl.u32 %v54, 7
    %v56 = vsub.s32 2, %v55
    %v57 = vrot.slane %v42, %v56
    %v58 = vlaneseq
    %v59 = vshrl.u32 %v58, 7
    %v60 = vsub.s32 4, %v59
    %v61 = vrot.slane %v42, %v60
    %v62 = vlaneseq
    %v63 = vshrl.u32 %v62, 7
    %v64 = vsub.s32 6, %v63
    %v65 = vrot.slane %v42, %v64
    %v66 = vlaneseq
    %v67 = vshrl.u32 %v66, 7
    %v68 = vsub.s32 0, %v67
    %v69 = vrot.slane %v53, %v68
    %v70 = vlaneseq
    %v71 = vshrl.u32 %v70, 7
    %v72 = vsub.s32 0, %v71
    %v73 = vrot.slane %v57, %v72
    %v74 = vlaneseq
    %v75 = vshrl.u32 %v74, 7
    %v76 = vsub.s32 0, %v75
    %v77 = vrot.slane %v61, %v76
    %v78 = vlaneseq
    %v79 = vshrl.u32 %v78, 7
    %v80 = vsub.s32 0, %v79
    %v81 = vrot.slane %v65, %v80
    %vm82 = vcmp.eq.s32.totalorder %v44, %v69
    %vm83 = vcmp.eq.s32.totalorder %v44, %v73
    %vm84 = vcmp.eq.s32.totalorder %v44, %v77
    %vm85 = vcmp.eq.s32.totalorder %v44, %v81
    %vm86 = vcmp.eq.s32.totalorder %v45, %v69
    %vm87 = vcmp.eq.s32.totalorder %v45, %v73
    %vm88 = vcmp.eq.s32.totalorder %v45, %v77
    %vm89 = vcmp.eq.s32.totalorder %v45, %v81
    %vm90 = vcmp.eq.s32.totalorder %v46, %v69
    %vm91 = vcmp.eq.s32.totalorder %v46, %v73
    %vm92 = vcmp.eq.s32.totalorder %v46, %v77
    %vm93 = vcmp.eq.s32.totalorder %v46, %v81
    %vm94 = vcmp.eq.s32.totalorder %v47, %v69
    %vm95 = vcmp.eq.s32.totalorder %v47, %v73
    %vm96 = vcmp.eq.s32.totalorder %v47, %v77
    %vm97 = vcmp.eq.s32.totalorder %v47, %v81
    %vm98 = vcmp.eq.s32.totalorder %v48, %v69
    %vm99 = vcmp.eq.s32.totalorder %v48, %v73
    %vm100 = vcmp.eq.s32.totalorder %v48, %v77
    %vm101 = vcmp.eq.s32.totalorder %v48, %v81
    %vm102 = vcmp.eq.s32.totalorder %v49, %v69
    %vm103 = vcmp.eq.s32.totalorder %v49, %v73
    %vm104 = vcmp.eq.s32.totalorder %v49, %v77
    %vm105 = vcmp.eq.s32.totalorder %v49, %v81
    %v106 = vlaneseq
    %v107 = vshrl.u32 %v106, 7
    %v108 = vsub.s32 1, %v107
    %v109 = vrot.slane %v42, %v108
    %v110 = vlaneseq
    %v111 = vshrl.u32 %v110, 7
    %v112 = vsub.s32 3, %v111
    %v113 = vrot.slane %v42, %v112
    %v114 = vlaneseq
    %v115 = vshrl.u32 %v114, 7
    %v116 = vsub.s32 5, %v115
    %v117 = vrot.slane %v42, %v116
    %v118 = vlaneseq
    %v119 = vshrl.u32 %v118, 7
    %v120 = vsub.s32 7, %v119
    %v121 = vrot.slane %v42, %v120
    %v122 = vlaneseq
    %v123 = vshrl.u32 %v122, 7
    %v124 = vsub.s32 1, %v123
    %v125 = vrot.slane %v109, %v124
    %v126 = vlaneseq
    %v127 = vshrl.u32 %v126, 7
    %v128 = vsub.s32 1, %v127
    %v129 = vrot.slane %v113, %v128
    %v130 = vlaneseq
    %v131 = vshrl.u32 %v130, 7
    %v132 = vsub.s32 1, %v131
    %v133 = vrot.slane %v117, %v132
    %v134 = vlaneseq
    %v135 = vshrl.u32 %v134, 7
    %v136 = vsub.s32 1, %v135
    %v137 = vrot.slane %v121, %v136
    %vm138 = vcmp.eq.s32.totalorder %v44, %v125
    %vm139 = vcmp.eq.s32.totalorder %v44, %v129
    %vm140 = vcmp.eq.s32.totalorder %v44, %v133
    %vm141 = vcmp.eq.s32.totalorder %v44, %v137
    %vm142 = vcmp.eq.s32.totalorder %v45, %v125
    %vm143 = vcmp.eq.s32.totalorder %v45, %v129
    %vm144 = vcmp.eq.s32.totalorder %v45, %v133
    %vm145 = vcmp.eq.s32.totalorder %v45, %v137
    %vm146 = vcmp.eq.s32.totalorder %v46, %v125
    %vm147 = vcmp.eq.s32.totalorder %v46, %v129
    %vm148 = vcmp.eq.s32.totalorder %v46, %v133
    %vm149 = vcmp.eq.s32.totalorder %v46, %v137
    %vm150 = vcmp.eq.s32.totalorder %v47, %v125
    %vm151 = vcmp.eq.s32.totalorder %v47, %v129
    %vm152 = vcmp.eq.s32.totalorder %v47, %v133
    %vm153 = vcmp.eq.s32.totalorder %v47, %v137
    %vm154 = vcmp.eq.s32.totalorder %v48, %v125
    %vm155 = vcmp.eq.s32.totalorder %v48, %v129
    %vm156 = vcmp.eq.s32.totalorder %v48, %v133
    %vm157 = vcmp.eq.s32.totalorder %v48, %v137
    %vm158 = vcmp.eq.s32.totalorder %v49, %v125
    %vm159 = vcmp.eq.s32.totalorder %v49, %v129
    %vm160 = vcmp.eq.s32.totalorder %v49, %v133
    %vm161 = vcmp.eq.s32.totalorder %v49, %v137
    %vm162 = vmor %vm82, %vm138
    %vm163 = vmor %vm83, %vm139
    %vm164 = vmor %vm84, %vm140
    %vm165 = vmor %vm85, %vm141
    %vm166 = vmor %vm86, %vm142
    %vm167 = vmor %vm87, %vm143
    %vm168 = vmor %vm88, %vm144
    %vm169 = vmor %vm89, %vm145
    %vm170 = vmor %vm90, %vm146
    %vm171 = vmor %vm91, %vm147
    %vm172 = vmor %vm92, %vm148
    %vm173 = vmor %vm93, %vm149
    %vm174 = vmor %vm94, %vm150
    %vm175 = vmor %vm95, %vm151
    %vm176 = vmor %vm96, %vm152
    %vm177 = vmor %vm97, %vm153
    %vm178 = vmor %vm98, %vm154
    %vm179 = vmor %vm99, %vm155
    %vm180 = vmor %vm100, %vm156
    %vm181 = vmor %vm101, %vm157
    %vm182 = vmor %vm102, %vm158
    %vm183 = vmor %vm103, %vm159
    %vm184 = vmor %vm104, %vm160
    %vm185 = vmor %vm105, %vm161
    %v186 = vsel %vm162, 1.0, 0.0
    %v187 = vsel %vm163, 1.0, 0.0
    %v188 = vsel %vm164, 1.0, 0.0
    %v189 = vsel %vm165, 1.0, 0.0
    %v190 = vsel %vm166, 1.0, 0.0
    %v191 = vsel %vm167, 1.0, 0.0
    %v192 = vsel %vm168, 1.0, 0.0
    %v193 = vsel %vm169, 1.0, 0.0
    %v194 = vsel %vm170, 1.0, 0.0
    %v195 = vsel %vm171, 1.0, 0.0
    %v196 = vsel %vm172, 1.0, 0.0
    %v197 = vsel %vm173, 1.0, 0.0
    %v198 = vsel %vm174, 1.0, 0.0
    %v199 = vsel %vm175, 1.0, 0.0
    %v200 = vsel %vm176, 1.0, 0.0
    %v201 = vsel %vm177, 1.0, 0.0
    %v202 = vsel %vm178, 1.0, 0.0
    %v203 = vsel %vm179, 1.0, 0.0
    %v204 = vsel %vm180, 1.0, 0.0
    %v205 = vsel %vm181, 1.0, 0.0
    %v206 = vsel %vm182, 1.0, 0.0
    %v207 = vsel %vm183, 1.0, 0.0
    %v208 = vsel %vm184, 1.0, 0.0
    %v209 = vsel %vm185, 1.0, 0.0
    %v210 = vld [vmem:[#allocation6] sm:$0xff]
    %v211 = vld [vmem:[#allocation6 + $0x8] sm:$0xff]
    %vm212 = vcmask 392192
    %v214 = vsel %vm212, %v210, 0
    %v217 = vsel %vm212, %v211, 0
    %219 = vmatprep.subr.mxu0 %v187
    %220 = vmatpush1.msra.mxu0 %v186
    %221 = vmatprep.subr.mxu0 %v191
    %222 = vmatpush1.msra.mxu0 %v190
    %223 = vmatprep.subr.mxu0 %v195
    %224 = vmatpush1.msra.mxu0 %v194
    %225 = vmatprep.subr.mxu0 %v199
    %226 = vmatpush1.msra.mxu0 %v198
    %227 = vmatprep.subr.mxu0 %v203
    %228 = vmatpush1.msra.mxu0 %v202
    %229 = vmatprep.subr.mxu0 %v207
    %230 = vmatpush1.msra.mxu0 %v206
    %231 = vmatprep.subr.mxu0 0.0
    %232 = vmatpush1.msra.mxu0 0.0
    %233 = vmatprep.subr.mxu0 0.0
    %234 = vmatpush1.msra.mxu0 0.0
    %235 = vmatprep.subr.mxu0 0.0
    %236 = vmatpush1.msra.mxu0 0.0
    %237 = vmatprep.subr.mxu0 0.0
    %238 = vmatpush1.msra.mxu0 0.0
    %239 = vmatprep.subr.mxu0 0.0
    %240 = vmatpush1.msra.mxu0 0.0
    %241 = vmatprep.subr.mxu0 0.0
    %242 = vmatpush1.msra.mxu0 0.0
    %243 = vmatprep.subr.mxu0 0.0
    %244 = vmatpush1.msra.mxu0 0.0
    %245 = vmatprep.subr.mxu0 0.0
    %246 = vmatpush1.msra.mxu0 0.0
    %247 = vmatprep.subr.mxu0 0.0
    %248 = vmatpush1.msra.mxu0 0.0
    %249 = vmatprep.subr.mxu0 0.0
    %250 = vmatpush1.msra.mxu0 0.0
    %251 = vmatprep.subr.mxu0 0.0
    %252 = vmatpush1.msra.mxu0 0.0
    %253 = vmatprep.subr.mxu0 0.0
    %254 = vmatpush1.msra.mxu0 0.0
    %255 = vmatprep.subr.mxu0 0.0
    %256 = vmatpush1.msra.mxu0 0.0
    %257 = vmatprep.subr.mxu0 0.0
    %258 = vmatpush1.msra.mxu0 0.0
    %259 = vmatprep.subr.mxu0 0.0
    %260 = vmatpush1.msra.mxu0 0.0
    %261 = vmatprep.subr.mxu0 0.0
    %262 = vmatpush1.msra.mxu0 0.0
    %263 = vmatprep.subr.mxu0 0.0
    %264 = vmatpush1.msra.mxu0 0.0
    %265 = vmatprep.subr.mxu0 0.0
    %266 = vmatpush1.msra.mxu0 0.0
    %267 = vmatprep.subr.mxu0 0.0
    %268 = vmatpush1.msra.mxu0 0.0
    %269 = vmatprep.subr.mxu0 0.0
    %270 = vmatpush1.msra.mxu0 0.0
    %271 = vmatprep.subr.mxu0 0.0
    %272 = vmatpush1.msra.mxu0 0.0
    %273 = vmatprep.subr.mxu0 0.0
    %274 = vmatpush1.msra.mxu0 0.0
    %275 = vmatprep.subr.mxu0 0.0
    %276 = vmatpush1.msra.mxu0 0.0
    %277 = vmatprep.subr.mxu0 0.0
    %278 = vmatpush1.msra.mxu0 0.0
    %279 = vmatprep.subr.mxu0 0.0
    %280 = vmatpush1.msra.mxu0 0.0
    %281 = vmatprep.subr.mxu0 0.0
    %282 = vmatpush1.msra.mxu0 0.0
    %283 = vmatprep.mubr.f32.mxu0 0.0
    %284 = vmatmul.mubr.f32.gmra.mrb[0].mxu0 %v214
    %v285 = vpop.f32.mrb[0].mxu0
    %v286 = vadd.f32 0.0, %v285
    %v287 = vpop.f32.mrb[0].mxu0
    %v288 = vadd.f32 0.0, %v287
    %289 = vmatprep.mubr.f32.mxu0 0.0
    %290 = vmatmul.mubr.f32.gmra.mrb[0].mxu0 %v217
    %v291 = vpop.f32.mrb[0].mxu0
    %v292 = vadd.f32 0.0, %v291
    %v293 = vpop.f32.mrb[0].mxu0
    %v294 = vadd.f32 0.0, %v293
    %295 = vdwg.mxu0
    %296 = vmatprep.subr.mxu0 %v189
    %297 = vmatpush1.msra.mxu0 %v188
    %298 = vmatprep.subr.mxu0 %v193
    %299 = vmatpush1.msra.mxu0 %v192
    %300 = vmatprep.subr.mxu0 %v197
    %301 = vmatpush1.msra.mxu0 %v196
    %302 = vmatprep.subr.mxu0 %v201
    %303 = vmatpush1.msra.mxu0 %v200
    %304 = vmatprep.subr.mxu0 %v205
    %305 = vmatpush1.msra.mxu0 %v204
    %306 = vmatprep.subr.mxu0 %v209
    %307 = vmatpush1.msra.mxu0 %v208
    %308 = vmatprep.subr.mxu0 0.0
    %309 = vmatpush1.msra.mxu0 0.0
    %310 = vmatprep.subr.mxu0 0.0
    %311 = vmatpush1.msra.mxu0 0.0
    %312 = vmatprep.subr.mxu0 0.0
    %313 = vmatpush1.msra.mxu0 0.0
    %314 = vmatprep.subr.mxu0 0.0
    %315 = vmatpush1.msra.mxu0 0.0
    %316 = vmatprep.subr.mxu0 0.0
    %317 = vmatpush1.msra.mxu0 0.0
    %318 = vmatprep.subr.mxu0 0.0
    %319 = vmatpush1.msra.mxu0 0.0
    %320 = vmatprep.subr.mxu0 0.0
    %321 = vmatpush1.msra.mxu0 0.0
    %322 = vmatprep.subr.mxu0 0.0
    %323 = vmatpush1.msra.mxu0 0.0
    %324 = vmatprep.subr.mxu0 0.0
    %325 = vmatpush1.msra.mxu0 0.0
    %326 = vmatprep.subr.mxu0 0.0
    %327 = vmatpush1.msra.mxu0 0.0
    %328 = vmatprep.subr.mxu0 0.0
    %329 = vmatpush1.msra.mxu0 0.0
    %330 = vmatprep.subr.mxu0 0.0
    %331 = vmatpush1.msra.mxu0 0.0
    %332 = vmatprep.subr.mxu0 0.0
    %333 = vmatpush1.msra.mxu0 0.0
    %334 = vmatprep.subr.mxu0 0.0
    %335 = vmatpush1.msra.mxu0 0.0
    %336 = vmatprep.subr.mxu0 0.0
    %337 = vmatpush1.msra.mxu0 0.0
    %338 = vmatprep.subr.mxu0 0.0
    %339 = vmatpush1.msra.mxu0 0.0
    %340 = vmatprep.subr.mxu0 0.0
    %341 = vmatpush1.msra.mxu0 0.0
    %342 = vmatprep.subr.mxu0 0.0
    %343 = vmatpush1.msra.mxu0 0.0
    %344 = vmatprep.subr.mxu0 0.0
    %345 = vmatpush1.msra.mxu0 0.0
    %346 = vmatprep.subr.mxu0 0.0
    %347 = vmatpush1.msra.mxu0 0.0
    %348 = vmatprep.subr.mxu0 0.0
    %349 = vmatpush1.msra.mxu0 0.0
    %350 = vmatprep.subr.mxu0 0.0
    %351 = vmatpush1.msra.mxu0 0.0
    %352 = vmatprep.subr.mxu0 0.0
    %353 = vmatpush1.msra.mxu0 0.0
    %354 = vmatprep.subr.mxu0 0.0
    %355 = vmatpush1.msra.mxu0 0.0
    %356 = vmatprep.subr.mxu0 0.0
    %357 = vmatpush1.msra.mxu0 0.0
    %358 = vmatprep.subr.mxu0 0.0
    %359 = vmatpush1.msra.mxu0 0.0
    %360 = vmatprep.mubr.f32.mxu0 0.0
    %361 = vmatmul.mubr.f32.gmra.mrb[0].mxu0 %v214
    %v362 = vpop.f32.mrb[0].mxu0
    %v363 = vadd.f32 0.0, %v362
    %v364 = vpop.f32.mrb[0].mxu0
    %v365 = vadd.f32 0.0, %v364
    %366 = vmatprep.mubr.f32.mxu0 0.0
    %367 = vmatmul.mubr.f32.gmra.mrb[0].mxu0 %v217
    %v368 = vpop.f32.mrb[0].mxu0
    %v369 = vadd.f32 0.0, %v368
    %v370 = vpop.f32.mrb[0].mxu0
    %v371 = vadd.f32 0.0, %v370
    %372 = vdwg.mxu0
    %v373 = vmul.f32 %v286, %v292
    %v374 = vmul.f32 %v288, %v294
    %v375 = vmul.f32 %v363, %v369
    %v376 = vmul.f32 %v365, %v371
    %v377 = vrot.slane %v373, 4
    %v378 = vadd.f32 %v373, %v377
    %v379 = vrot.slane %v378, 2
    %v380 = vadd.f32 %v378, %v379
    %v381 = vrot.slane %v380, 1
    %v382 = vadd.f32 %v380, %v381
    %v383 = vrot.slane %v374, 4
    %v384 = vadd.f32 %v374, %v383
    %v385 = vrot.slane %v384, 2
    %v386 = vadd.f32 %v384, %v385
    %v387 = vrot.slane %v386, 1
    %v388 = vadd.f32 %v386, %v387
    %v389 = vrot.slane %v375, 4
    %v390 = vadd.f32 %v375, %v389
    %v391 = vrot.slane %v390, 2
    %v392 = vadd.f32 %v390, %v391
    %v393 = vrot.slane %v392, 1
    %v394 = vadd.f32 %v392, %v393
    %v395 = vrot.slane %v376, 4
    %v396 = vadd.f32 %v376, %v395
    %v397 = vrot.slane %v396, 2
    %v398 = vadd.f32 %v396, %v397
    %v399 = vrot.slane %v398, 1
    %v400 = vadd.f32 %v398, %v399
    %s401 = sld [smem:[#allocation2]]
    %v402 = vstv %s401
    %v403 = vadd.f32 %v382, %v402
    %v404 = vadd.f32 %v388, %v402
    %v405 = vadd.f32 %v394, %v402
    %v406 = vadd.f32 %v400, %v402
    %v407 = vsub.f32 0.0, %v403
    %v408 = vsub.f32 0.0, %v404
    %v409 = vsub.f32 0.0, %v405
    %v410 = vsub.f32 0.0, %v406
    %v411 = vmul.f32 %v407, 1.442695
    %v412 = vpow.pop %v411
    %v413 = vmul.f32 %v408, 1.442695
    %v414 = vpow.pop %v413
    %v415 = vmul.f32 %v409, 1.442695
    %v416 = vpow.pop %v415
    %v417 = vmul.f32 %v410, 1.442695
    %v418 = vpow.pop %v417
    %v419 = vadd.f32 %v412, 1.0
    %v420 = vadd.f32 %v414, 1.0
    %v421 = vadd.f32 %v416, 1.0
    %v422 = vadd.f32 %v418, 1.0
    %v423 = vrcp.pop %v419
    %v424 = vrcp.pop %v420
    %v425 = vrcp.pop %v421
    %v426 = vrcp.pop %v422
    %v431 = vcombine.low %v423, %v424
    %v432 = vcombine.low %v425, %v426
    %v434 = vunpack.c.l.s4 1966171168
    %v435 = vunpack.c.0.s8 %v434
    %v436 = vlaneseq
    %v437 = vshrl.u32 %v436, 7
    %v438 = vsub.s32 %v435, %v437
    %v439 = vrot.slane %v431, %v438
    %v441 = vunpack.c.l.s4 1966171168
    %v442 = vunpack.c.0.s8 %v441
    %v443 = vlaneseq
    %v444 = vshrl.u32 %v443, 7
    %v445 = vsub.s32 %v442, %v444
    %v446 = vrot.slane %v432, %v445
    %v447 = vcombine.low %v439, %v446
    %v449 = vunpack.c.l.s4 1966171168
    %v450 = vunpack.c.0.s8 %v449
    %v451 = vlaneseq
    %v452 = vshrl.u32 %v451, 7
    %v453 = vsub.s32 %v450, %v452
    %v454 = vrot.slane %v447, %v453
    %v456 = vlaneseq
    %vm457 = vcmp.ge.s32.totalorder %v456, 0
    %vm458 = vcmp.lt.s32.totalorder %v456, 512
    %vm459 = vmand %vm457, %vm458
    %460 = vst.msk [vmem:[#allocation8] sm:$0xf] %vm459, %v454
    // Predicated region
    $region22: #{tpu_custom_call.1} parent=1 // pred_check
      _
    $region23: #{tpu_custom_call.1} parent=1 // pred_check_branch
      %462 = sbr.rel (0) target = $region25
    $region24: #{tpu_custom_call.1} parent=1 // pred_region
      %s464 = ssub.s32 64, 64
      %465 = vsyncadd [#allocation5], %s464
      %s467 = sshll.u32 [#allocation8], 4
      %s468 = int_to_ptr.vmem [resolvable:$true] %s467
      %470 = dma.vmem_to_hbm [thread:$0]  %s468, 64, %s3, [#allocation5]
    $region25: #{tpu_custom_call.1} parent=1 // pred_fallthru
      _
    // Predicated region
    $region26: #{tpu_custom_call.1} parent=1 // pred_check
      _
    $region27: #{tpu_custom_call.1} parent=1 // pred_check_branch
      %472 = sbr.rel (0) target = $region29
    $region28: #{tpu_custom_call.1} parent=1 // pred_region
      %473 = dma.done [#allocation5], 64
    $region29: #{tpu_custom_call.1} parent=1 // pred_fallthru
      _
    %474 = vsyncpa [#allocation4], 1
    %475 = vsyncpa [#allocation7], 1
    %476 = vsyncpa [#allocation5], 1

</llo_original>
